<compile_context>
chip_gen: v6e
topology: v6e:2x2x1
jax: 0.10.0
libtpu: 0.0.40
codegen_flags: <defaults>
</compile_context>

<pallas_src>
from functools import partial

import jax
import jax.numpy as jnp
from jax.experimental import pallas as pl
from jax.experimental.pallas import tpu as pltpu

_LANE = 128
_SUBLANE = 8


def _round_up(n, m):
    return ((n + m - 1) // m) * m


def _mlp_kernel(x_ref, w1_ref, b1_ref, w2_ref, b2_ref, o_ref):
    # Shapes (all static at trace time):
    #   x_ref : (TB, IN)        IN = 3   (full-extent last dim)
    #   w1_ref: (IN, HPAD)      HPAD = 128 (lane-padded hidden)
    #   b1_ref: (1, HPAD)
    #   w2_ref: (HID, OPAD)     HID = 5, OPAD = 128 (lane-padded output)
    #   b2_ref: (1, OPAD)
    #   o_ref : (TB, OPAD)      lane-dense output -> unmasked stores
    x = x_ref[...]
    w1 = w1_ref[...]
    w2 = w2_ref[...]

    in_size = x_ref.shape[1]
    hid_size = w2_ref.shape[0]

    # fc1: contraction over IN (=3), fully unrolled VPU broadcast-MACs (no MXU).
    acc = x[:, 0:1] * w1[0:1, :]
    for k in range(1, in_size):
        acc = acc + x[:, k:k + 1] * w1[k:k + 1, :]
    h = jnp.maximum(acc + b1_ref[...], 0.0)           # (TB, HPAD), ReLU

    # fc2: only the first `hid_size` (=5) hidden lanes are real; unrolled MACs.
    acc2 = h[:, 0:1] * w2[0:1, :]
    for k in range(1, hid_size):
        acc2 = acc2 + h[:, k:k + 1] * w2[k:k + 1, :]
    z = acc2 + b2_ref[...]                            # (TB, OPAD)

    # sigmoid(z) = 1 / (1 + exp(-z)); exp and reciprocal both go to the EUP.
    o_ref[...] = pl.reciprocal(1.0 + jnp.exp(-z), approx=False)


def prepare_params(w1, b1, w2, b2):
    """One-time (hoisted) lane padding of weights/biases to 128-wide slabs.

    w1: (in, hid), b1: (hid,), w2: (hid, out), b2: (out,)  ->  padded 2D f32.
    """
    in_size, hid = w1.shape
    _, out = w2.shape
    hpad = _round_up(hid, _LANE)
    opad = _round_up(out, _LANE)

    w1_p = jnp.zeros((in_size, hpad), jnp.float32).at[:, :hid].set(w1)
    b1_p = jnp.zeros((1, hpad), jnp.float32).at[0, :hid].set(b1)
    w2_p = jnp.zeros((hid, opad), jnp.float32).at[:, :out].set(w2)
    b2_p = jnp.zeros((1, opad), jnp.float32).at[0, :out].set(b2)
    return w1_p, b1_p, w2_p, b2_p


@partial(jax.jit, static_argnames=("out_size", "block_b"))
def robot_network_forward(x, w1_p, b1_p, w2_p, b2_p, *, out_size, block_b=256):
    """x: (B, input_size) f32. Returns (B, out_size) f32."""
    B, in_size = x.shape
    opad = w2_p.shape[1]

    # Batch tile: multiple of 8 (f32 sublane); cap at the sublane-rounded batch.
    tb = max(_SUBLANE, min(block_b, _round_up(B, _SUBLANE)))
    tb = _round_up(tb, _SUBLANE)
    b_pad = _round_up(B, tb)
    x_pad = jnp.pad(x, ((0, b_pad - B), (0, 0)))

    y_pad = pl.pallas_call(
        _mlp_kernel,
        out_shape=jax.ShapeDtypeStruct((b_pad, opad), jnp.float32),
        grid=(b_pad // tb,),
        in_specs=[
            pl.BlockSpec((tb, in_size), lambda i: (i, 0)),   # batch-tiled input
            pl.BlockSpec(w1_p.shape, lambda i: (0, 0)),      # resident weights
            pl.BlockSpec(b1_p.shape, lambda i: (0, 0)),
            pl.BlockSpec(w2_p.shape, lambda i: (0, 0)),
            pl.BlockSpec(b2_p.shape, lambda i: (0, 0)),
        ],
        out_specs=pl.BlockSpec((tb, opad), lambda i: (i, 0)),  # lane-dense out
        compiler_params=pltpu.CompilerParams(
            dimension_semantics=("parallel",),   # shard batch over v7x's 2 TCs
            vmem_limit_bytes=32 * 1024 * 1024,
        ),
    )(x_pad, w1_p, b1_p, w2_p, b2_p)

    return y_pad[:B, :out_size]


def init_params(key, input_size=3, hidden_size=5, output_size=3):
    """PyTorch nn.Linear-style uniform init. Weights stored transposed."""
    k1, k2, k3, k4 = jax.random.split(key, 4)
    bound1 = 1.0 / (input_size ** 0.5)
    bound2 = 1.0 / (hidden_size ** 0.5)
    w1 = jax.random.uniform(k1, (input_size, hidden_size), jnp.float32,
                            -bound1, bound1)
    b1 = jax.random.uniform(k2, (hidden_size,), jnp.float32, -bound1, bound1)
    w2 = jax.random.uniform(k3, (hidden_size, output_size), jnp.float32,
                            -bound2, bound2)
    b2 = jax.random.uniform(k4, (output_size,), jnp.float32, -bound2, bound2)
    return w1, b1, w2, b2


def reference_forward(x, w1, b1, w2, b2):
    h = jnp.maximum(x @ w1 + b1, 0.0)
    return jax.nn.sigmoid(h @ w2 + b2)


if __name__ == "__main__":
    key = jax.random.PRNGKey(0)
    kx, kp = jax.random.split(key)

    batch = 16                      # small demo batch; grid has 2 steps at TB=8
    input_size, hidden_size, output_size = 3, 5, 3

    x = jax.random.normal(kx, (batch, input_size), jnp.float32)
    w1, b1, w2, b2 = init_params(kp, input_size, hidden_size, output_size)

    # Padding / layout prep is done once, outside the per-call path.
    w1_p, b1_p, w2_p, b2_p = prepare_params(w1, b1, w2, b2)

    out = robot_network_forward(x, w1_p, b1_p, w2_p, b2_p,
                                out_size=output_size, block_b=8)
    out = jax.block_until_ready(out)

    ref = reference_forward(x, w1, b1, w2, b2)
    assert out.shape == (batch, output_size)
    assert jnp.allclose(out, ref, atol=1e-5, rtol=1e-5), "mismatch vs reference"

    print("KERNEL_OK")
</pallas_src>

<mosaic_0001>
module attributes {stable_mosaic.version = 11 : i64} {
  func.func @_mlp_kernel(%arg0: i32, %arg1: memref<8x3xf32, #tpu.memory_space<vmem>>, %arg2: memref<3x128xf32, #tpu.memory_space<vmem>>, %arg3: memref<1x128xf32, #tpu.memory_space<vmem>>, %arg4: memref<5x128xf32, #tpu.memory_space<vmem>>, %arg5: memref<1x128xf32, #tpu.memory_space<vmem>>, %arg6: memref<8x128xf32, #tpu.memory_space<vmem>>) attributes {dimension_semantics = [#tpu.dimension_semantics<parallel>], iteration_bounds = array<i64: 2>, scalar_prefetch = 0 : i64, scratch_operands = 0 : i64, tpu.core_type = #tpu.core_type<tc>, window_params = [{transform_indices = @transform_0, window_bounds = array<i64: 8, 3>}, {pipeline_mode = #tpu.pipeline_mode<synchronous>, transform_indices = @transform_1, window_bounds = array<i64: 3, 128>}, {pipeline_mode = #tpu.pipeline_mode<synchronous>, transform_indices = @transform_2, window_bounds = array<i64: 1, 128>}, {pipeline_mode = #tpu.pipeline_mode<synchronous>, transform_indices = @transform_3, window_bounds = array<i64: 5, 128>}, {pipeline_mode = #tpu.pipeline_mode<synchronous>, transform_indices = @transform_4, window_bounds = array<i64: 1, 128>}, {transform_indices = @transform_5, window_bounds = array<i64: 8, 128>}]} {
    %c0 = arith.constant 0 : index
    %c0_0 = arith.constant 0 : index
    %0 = vector.load %arg1[%c0, %c0_0] : memref<8x3xf32, #tpu.memory_space<vmem>>, vector<8x3xf32>
    %c0_1 = arith.constant 0 : index
    %c0_2 = arith.constant 0 : index
    %1 = vector.load %arg2[%c0_1, %c0_2] : memref<3x128xf32, #tpu.memory_space<vmem>>, vector<3x128xf32>
    %c0_3 = arith.constant 0 : index
    %c0_4 = arith.constant 0 : index
    %2 = vector.load %arg4[%c0_3, %c0_4] : memref<5x128xf32, #tpu.memory_space<vmem>>, vector<5x128xf32>
    %3 = vector.extract_strided_slice %0 {offsets = [0, 0], sizes = [8, 1], strides = [1, 1]} : vector<8x3xf32> to vector<8x1xf32>
    %4 = vector.extract_strided_slice %1 {offsets = [0, 0], sizes = [1, 128], strides = [1, 1]} : vector<3x128xf32> to vector<1x128xf32>
    %5 = vector.broadcast %3 : vector<8x1xf32> to vector<8x128xf32>
    %6 = vector.broadcast %4 : vector<1x128xf32> to vector<8x128xf32>
    %7 = arith.mulf %5, %6 : vector<8x128xf32>
    %8 = vector.extract_strided_slice %0 {offsets = [0, 1], sizes = [8, 1], strides = [1, 1]} : vector<8x3xf32> to vector<8x1xf32>
    %9 = vector.extract_strided_slice %1 {offsets = [1, 0], sizes = [1, 128], strides = [1, 1]} : vector<3x128xf32> to vector<1x128xf32>
    %10 = vector.broadcast %8 : vector<8x1xf32> to vector<8x128xf32>
    %11 = vector.broadcast %9 : vector<1x128xf32> to vector<8x128xf32>
    %12 = arith.mulf %10, %11 : vector<8x128xf32>
    %13 = arith.addf %7, %12 : vector<8x128xf32>
    %14 = vector.extract_strided_slice %0 {offsets = [0, 2], sizes = [8, 1], strides = [1, 1]} : vector<8x3xf32> to vector<8x1xf32>
    %15 = vector.extract_strided_slice %1 {offsets = [2, 0], sizes = [1, 128], strides = [1, 1]} : vector<3x128xf32> to vector<1x128xf32>
    %16 = vector.broadcast %14 : vector<8x1xf32> to vector<8x128xf32>
    %17 = vector.broadcast %15 : vector<1x128xf32> to vector<8x128xf32>
    %18 = arith.mulf %16, %17 : vector<8x128xf32>
    %19 = arith.addf %13, %18 : vector<8x128xf32>
    %c0_5 = arith.constant 0 : index
    %c0_6 = arith.constant 0 : index
    %20 = vector.load %arg3[%c0_5, %c0_6] : memref<1x128xf32, #tpu.memory_space<vmem>>, vector<1x128xf32>
    %21 = vector.broadcast %20 : vector<1x128xf32> to vector<8x128xf32>
    %22 = arith.addf %19, %21 : vector<8x128xf32>
    %cst = arith.constant 0.000000e+00 : f32
    %23 = vector.broadcast %cst : f32 to vector<8x128xf32>
    %24 = arith.maximumf %22, %23 : vector<8x128xf32>
    %25 = vector.extract_strided_slice %24 {offsets = [0, 0], sizes = [8, 1], strides = [1, 1]} : vector<8x128xf32> to vector<8x1xf32>
    %26 = vector.extract_strided_slice %2 {offsets = [0, 0], sizes = [1, 128], strides = [1, 1]} : vector<5x128xf32> to vector<1x128xf32>
    %27 = vector.broadcast %25 : vector<8x1xf32> to vector<8x128xf32>
    %28 = vector.broadcast %26 : vector<1x128xf32> to vector<8x128xf32>
    %29 = arith.mulf %27, %28 : vector<8x128xf32>
    %30 = vector.extract_strided_slice %24 {offsets = [0, 1], sizes = [8, 1], strides = [1, 1]} : vector<8x128xf32> to vector<8x1xf32>
    %31 = vector.extract_strided_slice %2 {offsets = [1, 0], sizes = [1, 128], strides = [1, 1]} : vector<5x128xf32> to vector<1x128xf32>
    %32 = vector.broadcast %30 : vector<8x1xf32> to vector<8x128xf32>
    %33 = vector.broadcast %31 : vector<1x128xf32> to vector<8x128xf32>
    %34 = arith.mulf %32, %33 : vector<8x128xf32>
    %35 = arith.addf %29, %34 : vector<8x128xf32>
    %36 = vector.extract_strided_slice %24 {offsets = [0, 2], sizes = [8, 1], strides = [1, 1]} : vector<8x128xf32> to vector<8x1xf32>
    %37 = vector.extract_strided_slice %2 {offsets = [2, 0], sizes = [1, 128], strides = [1, 1]} : vector<5x128xf32> to vector<1x128xf32>
    %38 = vector.broadcast %36 : vector<8x1xf32> to vector<8x128xf32>
    %39 = vector.broadcast %37 : vector<1x128xf32> to vector<8x128xf32>
    %40 = arith.mulf %38, %39 : vector<8x128xf32>
    %41 = arith.addf %35, %40 : vector<8x128xf32>
    %42 = vector.extract_strided_slice %24 {offsets = [0, 3], sizes = [8, 1], strides = [1, 1]} : vector<8x128xf32> to vector<8x1xf32>
    %43 = vector.extract_strided_slice %2 {offsets = [3, 0], sizes = [1, 128], strides = [1, 1]} : vector<5x128xf32> to vector<1x128xf32>
    %44 = vector.broadcast %42 : vector<8x1xf32> to vector<8x128xf32>
    %45 = vector.broadcast %43 : vector<1x128xf32> to vector<8x128xf32>
    %46 = arith.mulf %44, %45 : vector<8x128xf32>
    %47 = arith.addf %41, %46 : vector<8x128xf32>
    %48 = vector.extract_strided_slice %24 {offsets = [0, 4], sizes = [8, 1], strides = [1, 1]} : vector<8x128xf32> to vector<8x1xf32>
    %49 = vector.extract_strided_slice %2 {offsets = [4, 0], sizes = [1, 128], strides = [1, 1]} : vector<5x128xf32> to vector<1x128xf32>
    %50 = vector.broadcast %48 : vector<8x1xf32> to vector<8x128xf32>
    %51 = vector.broadcast %49 : vector<1x128xf32> to vector<8x128xf32>
    %52 = arith.mulf %50, %51 : vector<8x128xf32>
    %53 = arith.addf %47, %52 : vector<8x128xf32>
    %c0_7 = arith.constant 0 : index
    %c0_8 = arith.constant 0 : index
    %54 = vector.load %arg5[%c0_7, %c0_8] : memref<1x128xf32, #tpu.memory_space<vmem>>, vector<1x128xf32>
    %55 = vector.broadcast %54 : vector<1x128xf32> to vector<8x128xf32>
    %56 = arith.addf %53, %55 : vector<8x128xf32>
    %cst_9 = arith.constant 0.000000e+00 : f32
    %57 = vector.broadcast %cst_9 : f32 to vector<8x128xf32>
    %58 = arith.subf %57, %56 : vector<8x128xf32>
    %59 = math.exp %58 : vector<8x128xf32>
    %cst_10 = arith.constant 1.000000e+00 : f32
    %60 = vector.broadcast %cst_10 : f32 to vector<8x128xf32>
    %61 = arith.addf %60, %59 : vector<8x128xf32>
    %62 = tpu.reciprocal %61 : vector<8x128xf32> -> vector<8x128xf32>
    %c0_11 = arith.constant 0 : index
    %c0_12 = arith.constant 0 : index
    %63 = vector.load %arg6[%c0_11, %c0_12] : memref<8x128xf32, #tpu.memory_space<vmem>>, vector<8x128xf32>
    tpu.vector_store %arg6[%c0_11, %c0_12], %62 {strides = array<i32>} : memref<8x128xf32, #tpu.memory_space<vmem>>, vector<8x128xf32>,
    return
  }
  func.func @transform_0(%arg0: i32) -> (i32, i32) {
    %c0_i32 = arith.constant 0 : i32
    %c0_i32_0 = arith.constant 0 : i32
    return %arg0, %c0_i32 : i32, i32
  }
  func.func @transform_1(%arg0: i32) -> (i32, i32) {
    %c0_i32 = arith.constant 0 : i32
    %c0_i32_0 = arith.constant 0 : i32
    %c0_i32_1 = arith.constant 0 : i32
    return %c0_i32, %c0_i32_0 : i32, i32
  }
  func.func @transform_2(%arg0: i32) -> (i32, i32) {
    %c0_i32 = arith.constant 0 : i32
    %c0_i32_0 = arith.constant 0 : i32
    %c0_i32_1 = arith.constant 0 : i32
    return %c0_i32, %c0_i32_0 : i32, i32
  }
  func.func @transform_3(%arg0: i32) -> (i32, i32) {
    %c0_i32 = arith.constant 0 : i32
    %c0_i32_0 = arith.constant 0 : i32
    %c0_i32_1 = arith.constant 0 : i32
    return %c0_i32, %c0_i32_0 : i32, i32
  }
  func.func @transform_4(%arg0: i32) -> (i32, i32) {
    %c0_i32 = arith.constant 0 : i32
    %c0_i32_0 = arith.constant 0 : i32
    %c0_i32_1 = arith.constant 0 : i32
    return %c0_i32, %c0_i32_0 : i32, i32
  }
  func.func @transform_5(%arg0: i32) -> (i32, i32) {
    %c0_i32 = arith.constant 0 : i32
    %c0_i32_0 = arith.constant 0 : i32
    return %arg0, %c0_i32 : i32, i32
  }
}

</mosaic_0001>

<llo_original>
// kernel: robot_network_forward.1
$region0: #{robot_network_forward.1}
  #allocation0 [shape = 'u32[]', space=smem, size = 0x4, offset = 0x4, fixed_abs, tag = 'smem constant byte address 0x4 - core index']
  #allocation1 [shape = 'u32[144,128]{1,0:T(1,128)}', space=vmem, size = 0x12000, scoped, tag = 'internal scratch']
  %s0 = inlined_call_operand.vmem [shape: f32[16,3], index: 0, kind: input, shape index: {}]
  %s1 = inlined_call_operand.vmem [shape: f32[3,128], index: 1, kind: input, shape index: {}]
  %s2 = inlined_call_operand.vmem [shape: f32[1,128], index: 2, kind: input, shape index: {}]
  %s3 = inlined_call_operand.vmem [shape: f32[5,128], index: 3, kind: input, shape index: {}]
  %s4 = inlined_call_operand.vmem [shape: f32[1,128], index: 4, kind: input, shape index: {}]
  %s5 = inlined_call_operand.vmem [shape: f32[16,128], index: 5, kind: output, shape index: {}]
  %s6 = sld [smem:[#allocation0]]
  $region53: #{robot_network_forward.1} parent=0
    _
  %s8 = ssub.s32 1, %s6
  %s9 = scalar_select 0, %s8, %s6
  loop: start=0, step=1, limit=4
  $region2: #{robot_network_forward.1} parent=0 // loop_pre_header
    _
  $region3: #{robot_network_forward.1} parent=0 // loop_header
    %s11 = sphi 0, %s15
    %p12 = scmp.ge.s32.totalorder %s11, 4
    %s21 = sphi 0, %s23
    %s24 = sphi 0, %s21
    %s25 = sphi 0, %s24
    %s41 = sphi 0, %s25
    %s45 = sphi 0, %s45
    %s47 = sphi 0, %s45
    %s48 = sphi 0, %s47
    %s62 = sphi 0, %s48
    %s66 = sphi 0, %s66
    %s68 = sphi 0, %s66
    %s69 = sphi 0, %s68
    %s83 = sphi 0, %s69
    %s87 = sphi 0, %s87
    %s89 = sphi 0, %s87
    %s90 = sphi 0, %s89
    %s104 = sphi 0, %s90
    %s108 = sphi 0, %s108
    %s110 = sphi 0, %s108
    %s111 = sphi 0, %s110
    %s125 = sphi 0, %s111
    %s131 = sphi 0, %s133
    %s134 = sphi 0, %s131
    %s135 = sphi 0, %s134
    %s151 = sphi 0, %s135
  $region4: #{robot_network_forward.1} parent=0 // loop_header_branch
    %14 = sbr.rel (%p12) target = $region8
  $region5: #{robot_network_forward.1} parent=0 // loop_body
    %s16 = ssub.s32 %s11, 1
    %s17 = ssub.s32 %s11, 2
    %s18 = sadd.s32 %s11, 1
    %s19 = ssub.s32 %s11, %s18
    %p20 = scmp.eq.s32.totalorder %s19, 0
    %s22 = sadd.s32 %s21, 1
    %s23 = scalar_select %p20, %s21, %s22
    %p26 = pneg %p20
    %p27 = scmp.eq.s32.totalorder %s11, 1
    %p28 = por %p26, %p27
    %p29 = scmp.ne.s32.totalorder %s21, %s24
    %p30 = scmp.eq.s32.totalorder %s11, 0
    %p31 = por %p29, %p30
    %p32 = scmp.ne.s32.totalorder %s21, %s24
    %p33 = scmp.eq.s32.totalorder %s16, 1
    %p34 = por %p32, %p33
    %p35 = scmp.ne.s32.totalorder %s24, %s25
    %p36 = scmp.eq.s32.totalorder %s16, 0
    %p37 = por %p35, %p36
    %p38 = scmp.ne.s32.totalorder %s24, %s25
    %p39 = scmp.eq.s32.totalorder %s17, 1
    %p40 = por %p38, %p39
    %p42 = scmp.ne.s32.totalorder %s25, %s41
    %p43 = scmp.eq.s32.totalorder %s17, 0
    %p44 = por %p42, %p43
    %s46 = sadd.s32 %s45, 1
    %p49 = scmp.eq.s32.totalorder %s11, 1
    %p50 = scmp.ne.s32.totalorder %s45, %s47
    %p51 = scmp.eq.s32.totalorder %s11, 0
    %p52 = por %p50, %p51
    %p53 = scmp.ne.s32.totalorder %s45, %s47
    %p54 = scmp.eq.s32.totalorder %s16, 1
    %p55 = por %p53, %p54
    %p56 = scmp.ne.s32.totalorder %s47, %s48
    %p57 = scmp.eq.s32.totalorder %s16, 0
    %p58 = por %p56, %p57
    %p59 = scmp.ne.s32.totalorder %s47, %s48
    %p60 = scmp.eq.s32.totalorder %s17, 1
    %p61 = por %p59, %p60
    %p63 = scmp.ne.s32.totalorder %s48, %s62
    %p64 = scmp.eq.s32.totalorder %s17, 0
    %p65 = por %p63, %p64
    %s67 = sadd.s32 %s66, 1
    %p70 = scmp.eq.s32.totalorder %s11, 1
    %p71 = scmp.ne.s32.totalorder %s66, %s68
    %p72 = scmp.eq.s32.totalorder %s11, 0
    %p73 = por %p71, %p72
    %p74 = scmp.ne.s32.totalorder %s66, %s68
    %p75 = scmp.eq.s32.totalorder %s16, 1
    %p76 = por %p74, %p75
    %p77 = scmp.ne.s32.totalorder %s68, %s69
    %p78 = scmp.eq.s32.totalorder %s16, 0
    %p79 = por %p77, %p78
    %p80 = scmp.ne.s32.totalorder %s68, %s69
    %p81 = scmp.eq.s32.totalorder %s17, 1
    %p82 = por %p80, %p81
    %p84 = scmp.ne.s32.totalorder %s69, %s83
    %p85 = scmp.eq.s32.totalorder %s17, 0
    %p86 = por %p84, %p85
    %s88 = sadd.s32 %s87, 1
    %p91 = scmp.eq.s32.totalorder %s11, 1
    %p92 = scmp.ne.s32.totalorder %s87, %s89
    %p93 = scmp.eq.s32.totalorder %s11, 0
    %p94 = por %p92, %p93
    %p95 = scmp.ne.s32.totalorder %s87, %s89
    %p96 = scmp.eq.s32.totalorder %s16, 1
    %p97 = por %p95, %p96
    %p98 = scmp.ne.s32.totalorder %s89, %s90
    %p99 = scmp.eq.s32.totalorder %s16, 0
    %p100 = por %p98, %p99
    %p101 = scmp.ne.s32.totalorder %s89, %s90
    %p102 = scmp.eq.s32.totalorder %s17, 1
    %p103 = por %p101, %p102
    %p105 = scmp.ne.s32.totalorder %s90, %s104
    %p106 = scmp.eq.s32.totalorder %s17, 0
    %p107 = por %p105, %p106
    %s109 = sadd.s32 %s108, 1
    %p112 = scmp.eq.s32.totalorder %s11, 1
    %p113 = scmp.ne.s32.totalorder %s108, %s110
    %p114 = scmp.eq.s32.totalorder %s11, 0
    %p115 = por %p113, %p114
    %p116 = scmp.ne.s32.totalorder %s108, %s110
    %p117 = scmp.eq.s32.totalorder %s16, 1
    %p118 = por %p116, %p117
    %p119 = scmp.ne.s32.totalorder %s110, %s111
    %p120 = scmp.eq.s32.totalorder %s16, 0
    %p121 = por %p119, %p120
    %p122 = scmp.ne.s32.totalorder %s110, %s111
    %p123 = scmp.eq.s32.totalorder %s17, 1
    %p124 = por %p122, %p123
    %p126 = scmp.ne.s32.totalorder %s111, %s125
    %p127 = scmp.eq.s32.totalorder %s17, 0
    %p128 = por %p126, %p127
    %s129 = ssub.s32 %s11, %s18
    %p130 = scmp.eq.s32.totalorder %s129, 0
    %s132 = sadd.s32 %s131, 1
    %s133 = scalar_select %p130, %s131, %s132
    %p136 = pneg %p130
    %p137 = scmp.eq.s32.totalorder %s11, 1
    %p138 = por %p136, %p137
    %p139 = scmp.ne.s32.totalorder %s131, %s134
    %p140 = scmp.eq.s32.totalorder %s11, 0
    %p141 = por %p139, %p140
    %p142 = scmp.ne.s32.totalorder %s131, %s134
    %p143 = scmp.eq.s32.totalorder %s16, 1
    %p144 = por %p142, %p143
    %p145 = scmp.ne.s32.totalorder %s134, %s135
    %p146 = scmp.eq.s32.totalorder %s16, 0
    %p147 = por %p145, %p146
    %p148 = scmp.ne.s32.totalorder %s134, %s135
    %p149 = scmp.eq.s32.totalorder %s17, 1
    %p150 = por %p148, %p149
    %p152 = scmp.ne.s32.totalorder %s135, %s151
    %p153 = scmp.eq.s32.totalorder %s17, 0
    %p154 = por %p152, %p153
    %p155 = scmp.le.s32.totalorder 1, %s11
    %p156 = scmp.lt.s32.totalorder %s11, 3
    %p157 = pnand %p155, %p156
    %p158 = pneg %p157
    // Predicated region
    $region9: #{robot_network_forward.1} parent=5 // pred_check
      _
    $region10: #{robot_network_forward.1} parent=5 // pred_check_branch
      %160 = sbr.rel (%p157) target = $region12
    $region11: #{robot_network_forward.1} parent=5 // pred_region
      %s161 = ssub.s32 %s11, 1
      // Predicated region
      $region13: #{robot_network_forward.1} parent=11 // pred_check
        %p162 = pneg %p58
      $region14: #{robot_network_forward.1} parent=11 // pred_check_branch
        %164 = sbr.rel (%p162) target = $region16
      $region15: #{robot_network_forward.1} parent=11 // pred_region
        _
      $region16: #{robot_network_forward.1} parent=11 // pred_fallthru
        _
      // Predicated region
      $region17: #{robot_network_forward.1} parent=11 // pred_check
        %p165 = pneg %p79
      $region18: #{robot_network_forward.1} parent=11 // pred_check_branch
        %167 = sbr.rel (%p165) target = $region20
      $region19: #{robot_network_forward.1} parent=11 // pred_region
        _
      $region20: #{robot_network_forward.1} parent=11 // pred_fallthru
        _
      // Predicated region
      $region21: #{robot_network_forward.1} parent=11 // pred_check
        %p168 = pneg %p100
      $region22: #{robot_network_forward.1} parent=11 // pred_check_branch
        %170 = sbr.rel (%p168) target = $region24
      $region23: #{robot_network_forward.1} parent=11 // pred_region
        _
      $region24: #{robot_network_forward.1} parent=11 // pred_fallthru
        _
      // Predicated region
      $region25: #{robot_network_forward.1} parent=11 // pred_check
        %p171 = pneg %p121
      $region26: #{robot_network_forward.1} parent=11 // pred_check_branch
        %173 = sbr.rel (%p171) target = $region28
      $region27: #{robot_network_forward.1} parent=11 // pred_region
        _
      $region28: #{robot_network_forward.1} parent=11 // pred_fallthru
        _
    $region12: #{robot_network_forward.1} parent=5 // pred_fallthru
      _
    %p174 = scmp.lt.s32.totalorder %s11, 2
    // Predicated region
    $region29: #{robot_network_forward.1} parent=5 // pred_check
      %p175 = pneg %p174
    $region30: #{robot_network_forward.1} parent=5 // pred_check_branch
      %177 = sbr.rel (%p175) target = $region32
    $region31: #{robot_network_forward.1} parent=5 // pred_region
      // Predicated region
      $region33: #{robot_network_forward.1} parent=31 // pred_check
        %p178 = pneg %p31
      $region34: #{robot_network_forward.1} parent=31 // pred_check_branch
        %180 = sbr.rel (%p178) target = $region36
      $region35: #{robot_network_forward.1} parent=31 // pred_region
        %p181 = scmp.lt.s32.totalorder %s11, 1
        %s182 = scalar_select %p181, %s11, 1
        %s183 = smul.addr %s182, 8
        %s184 = scalar_lea.vmem %s0, %s183
      $region36: #{robot_network_forward.1} parent=31 // pred_fallthru
        _
    $region32: #{robot_network_forward.1} parent=5 // pred_fallthru
      _
    %p185 = scmp.le.s32.totalorder 1, %s11
    %p186 = scmp.lt.s32.totalorder %s11, 3
    %p187 = pnand %p185, %p186
    %p188 = pneg %p187
    // Predicated region
    $region37: #{robot_network_forward.1} parent=5 // pred_check
      _
    $region38: #{robot_network_forward.1} parent=5 // pred_check_branch
      %190 = sbr.rel (%p187) target = $region40
    $region39: #{robot_network_forward.1} parent=5 // pred_region
      %s191 = ssub.s32 %s11, 1
      %p192 = scmp.lt.s32.totalorder %s16, 1
      %s193 = scalar_select %p192, %s16, 1
      %s194 = smul.addr %s193, 8
      %s195 = scalar_lea.vmem %s0, %s194
      %p196 = pneg %p37
      %p197 = pneg %p34
      %p198 = pneg %p58
      %p199 = pneg %p55
      %p200 = pneg %p79
      %p201 = pneg %p76
      %p202 = pneg %p100
      %p203 = pneg %p97
      %p204 = pneg %p121
      %p205 = pneg %p118
      %p206 = pneg %p147
      %p207 = pneg %p144
      %p208 = scmp.lt.s32.totalorder %s16, 1
      %s209 = scalar_select %p208, %s16, 1
      %s210 = smul.addr %s209, 8
      %s211 = scalar_lea.vmem %s5, %s210
      %p212 = scmp.lt.s32.totalorder %s16, 1
      %s213 = scalar_select %p212, %s16, 1
      %s214 = smul.addr %s213, 8
      %s215 = scalar_lea.vmem %s0, %s214
      %p216 = scmp.lt.s32.totalorder %s16, 1
      %s217 = scalar_select %p216, %s16, 1
      %s218 = smul.addr %s217, 8
      %s219 = scalar_lea.vmem %s5, %s218
      %v220 = vld [vmem:[%s215] sm:$0xff]
      %v221 = vld [vmem:[%s1] sm:$0x7]
      %v222 = vld [vmem:[%s3] sm:$0x1f]
      %224 = vset.pattern.permute.xlu0 0
      %225 = vperm.xlu0 %224, %v220
      %v226 = vpop.permute.xlu0 %225
      %v228 = vlaneseq
      %v229 = vshrl.u32 %v228, 7
      %v230 = vsub.s32 0, %v229
      %v231 = vrot.slane %v221, %v230
      %v232 = vmul.f32 %v226, %v231
      %233 = vset.pattern.permute.xlu0 1
      %234 = vperm.xlu0 %233, %v220
      %v235 = vpop.permute.xlu0 %234
      %v237 = vlaneseq
      %v238 = vshrl.u32 %v237, 7
      %v239 = vsub.s32 1, %v238
      %v240 = vrot.slane %v221, %v239
      %v241 = vmul.f32 %v235, %v240
      %v242 = vadd.f32 %v232, %v241
      %243 = vset.pattern.permute.xlu0 2
      %244 = vperm.xlu0 %243, %v220
      %v245 = vpop.permute.xlu0 %244
      %v247 = vlaneseq
      %v248 = vshrl.u32 %v247, 7
      %v249 = vsub.s32 2, %v248
      %v250 = vrot.slane %v221, %v249
      %v251 = vmul.f32 %v245, %v250
      %v252 = vadd.f32 %v242, %v251
      %v253 = vld [vmem:[%s2] sm:$0x1]
      %v255 = vlaneseq
      %v256 = vshrl.u32 %v255, 7
      %v257 = vsub.s32 0, %v256
      %v258 = vrot.slane %v253, %v257
      %v260 = vadd.f32 %v252, %v258
      %v261 = vmax.f32 %v260, 0.0
      %263 = vset.pattern.permute.xlu0 0
      %264 = vperm.xlu0 %263, %v261
      %v265 = vpop.permute.xlu0 %264
      %v267 = vlaneseq
      %v268 = vshrl.u32 %v267, 7
      %v269 = vsub.s32 0, %v268
      %v270 = vrot.slane %v222, %v269
      %v271 = vmul.f32 %v265, %v270
      %272 = vset.pattern.permute.xlu0 1
      %273 = vperm.xlu0 %272, %v261
      %v274 = vpop.permute.xlu0 %273
      %v276 = vlaneseq
      %v277 = vshrl.u32 %v276, 7
      %v278 = vsub.s32 1, %v277
      %v279 = vrot.slane %v222, %v278
      %v280 = vmul.f32 %v274, %v279
      %v281 = vadd.f32 %v271, %v280
      %282 = vset.pattern.permute.xlu0 2
      %283 = vperm.xlu0 %282, %v261
      %v284 = vpop.permute.xlu0 %283
      %v286 = vlaneseq
      %v287 = vshrl.u32 %v286, 7
      %v288 = vsub.s32 2, %v287
      %v289 = vrot.slane %v222, %v288
      %v290 = vmul.f32 %v284, %v289
      %v291 = vadd.f32 %v281, %v290
      %292 = vset.pattern.permute.xlu0 3
      %293 = vperm.xlu0 %292, %v261
      %v294 = vpop.permute.xlu0 %293
      %v296 = vlaneseq
      %v297 = vshrl.u32 %v296, 7
      %v298 = vsub.s32 3, %v297
      %v299 = vrot.slane %v222, %v298
      %v300 = vmul.f32 %v294, %v299
      %v301 = vadd.f32 %v291, %v300
      %302 = vset.pattern.permute.xlu0 4
      %303 = vperm.xlu0 %302, %v261
      %v304 = vpop.permute.xlu0 %303
      %v306 = vlaneseq
      %v307 = vshrl.u32 %v306, 7
      %v308 = vsub.s32 4, %v307
      %v309 = vrot.slane %v222, %v308
      %v310 = vmul.f32 %v304, %v309
      %v311 = vadd.f32 %v301, %v310
      %v312 = vld [vmem:[%s4] sm:$0x1]
      %v314 = vlaneseq
      %v315 = vshrl.u32 %v314, 7
      %v316 = vsub.s32 0, %v315
      %v317 = vrot.slane %v312, %v316
      %v319 = vadd.f32 %v311, %v317
      %v320 = vsub.f32 0.0, %v319
      %v321 = vmul.f32 %v320, 1.442695
      %v322 = vpow.pop %v321
      %v323 = vadd.f32 %v322, 1.0
      %v324 = vrcp.pop %v323
      %325 = vst [vmem:[%s219] sm:$0xff] %v324
      %p326 = scmp.lt.s32.totalorder %s16, 1
      %s327 = scalar_select %p326, %s16, 1
      %s328 = smul.addr %s327, 8
      %s329 = scalar_lea.vmem %s5, %s328
      // Predicated region
      $region41: #{robot_network_forward.1} parent=39 // pred_check
        %p330 = pneg %p144
      $region42: #{robot_network_forward.1} parent=39 // pred_check_branch
        %332 = sbr.rel (%p330) target = $region44
      $region43: #{robot_network_forward.1} parent=39 // pred_region
        _
      $region44: #{robot_network_forward.1} parent=39 // pred_fallthru
        _
    $region40: #{robot_network_forward.1} parent=5 // pred_fallthru
      _
    %p333 = scmp.le.s32.totalorder 2, %s11
    // Predicated region
    $region45: #{robot_network_forward.1} parent=5 // pred_check
      %p334 = pneg %p333
    $region46: #{robot_network_forward.1} parent=5 // pred_check_branch
      %336 = sbr.rel (%p334) target = $region48
    $region47: #{robot_network_forward.1} parent=5 // pred_region
      %s337 = ssub.s32 %s11, 2
      // Predicated region
      $region49: #{robot_network_forward.1} parent=47 // pred_check
        %p338 = pneg %p150
      $region50: #{robot_network_forward.1} parent=47 // pred_check_branch
        %340 = sbr.rel (%p338) target = $region52
      $region51: #{robot_network_forward.1} parent=47 // pred_region
        %p341 = scmp.lt.s32.totalorder %s17, 1
        %s342 = scalar_select %p341, %s17, 1
        %s343 = smul.addr %s342, 8
        %s344 = scalar_lea.vmem %s5, %s343
      $region52: #{robot_network_forward.1} parent=47 // pred_fallthru
        _
    $region48: #{robot_network_forward.1} parent=5 // pred_fallthru
      _
  $region6: #{robot_network_forward.1} parent=0 // loop_footer
    %s15 = sadd.s32 1, %s11
  $region7: #{robot_network_forward.1} parent=0 // loop_footer_branch
    %10 = sbr.rel target = $region3
  $region8: #{robot_network_forward.1} parent=0 // loop_exit
    _

</llo_original>
